<compile_context>
chip_gen: v5e
topology: v5e:2x2
jax: 0.10.0
libtpu: 0.0.40
codegen_flags: <defaults>
</compile_context>

<pallas_src>
import math
import jax
import jax.numpy as jnp
from jax.experimental import pallas as pl
from jax.experimental.pallas import tpu as pltpu

_NEG_INF = -1e30  # finite large-negative mask value (avoids exp(-inf - -inf) NaNs)
_VMEM_LIMIT = 48 * 1024 * 1024


# ----------------------------- tile selection -----------------------------

def _pick_tile(dim, target, multiple):
    """Largest divisor of `dim` that is <= target and a multiple of `multiple`.

    Falls back to the full dimension (always layout-legal: "equals full array dim")
    when no such divisor exists — never silently picks a non-aligned partial tile.
    """
    for t in range(min(dim, target), 0, -1):
        if dim % t == 0 and t % multiple == 0:
            return t
    return dim


# ----------------------------- tiled linear (x @ w.T) -----------------------------

def _linear_kernel(x_ref, w_ref, o_ref, acc_ref):
    # x_ref: (tm, tk); w_ref: (tk, tn) [pre-transposed weight]; o_ref: (tm, tn)
    @pl.when(pl.program_id(2) == 0)
    def _():
        acc_ref[...] = jnp.zeros_like(acc_ref)

    acc_ref[...] += jnp.dot(x_ref[...], w_ref[...],
                            preferred_element_type=jnp.float32)

    @pl.when(pl.program_id(2) == pl.num_programs(2) - 1)
    def _():
        o_ref[...] = acc_ref[...].astype(o_ref.dtype)


def pallas_linear(x, w, *, tm_target=256, tn_target=256, tk_target=512):
    """x: (M, K); w: (N, K) (nn.Linear weight layout). Returns x @ w.T -> (M, N)."""
    M, K = x.shape
    N, K2 = w.shape
    assert K == K2
    # Transpose once outside pallas_call (weight-load time in a real model) so the
    # kernel contracts (tm,tk)@(tk,tn) directly — no per-tile XLU transpose.
    w_t = jnp.transpose(w)                       # (K, N)
    tm = _pick_tile(M, tm_target, 8)             # second-minor of x / out blocks
    tn = _pick_tile(N, tn_target, 128)           # lane dim of w_t / out blocks
    tk = _pick_tile(K, tk_target, 128)           # lane of x block, sublane of w_t
    grid = (M // tm, N // tn, K // tk)
    return pl.pallas_call(
        _linear_kernel,
        out_shape=jax.ShapeDtypeStruct((M, N), x.dtype),
        grid=grid,
        in_specs=[
            pl.BlockSpec((tm, tk), lambda i, j, k: (i, k)),
            pl.BlockSpec((tk, tn), lambda i, j, k: (k, j)),
        ],
        out_specs=pl.BlockSpec((tm, tn), lambda i, j, k: (i, j)),
        scratch_shapes=[pltpu.VMEM((tm, tn), jnp.float32)],
        compiler_params=pltpu.CompilerParams(
            dimension_semantics=("parallel", "parallel", "arbitrary"),
            vmem_limit_bytes=_VMEM_LIMIT),
    )(x, w_t)


# ----------------------------- flash-style causal attention -----------------------------

def _make_flash_kernel(tq, tk, rep, hd):
    mq = rep * tq  # all query heads of a GQA group stacked into the matmul M dim

    def kernel(q_ref, k_ref, v_ref, o_ref, m_ref, l_ref, acc_ref):
        # q_ref/o_ref: (rep, tq, hd); k_ref/v_ref: (S, hd) — one fetch per (b, kv-head)
        qi = pl.program_id(2)

        m_ref[...] = jnp.full(m_ref.shape, _NEG_INF, dtype=jnp.float32)
        l_ref[...] = jnp.zeros(l_ref.shape, dtype=jnp.float32)
        acc_ref[...] = jnp.zeros(acc_ref.shape, dtype=jnp.float32)

        # (rep, tq, hd) -> (rep*tq, hd): free relabel (tq is 8-aligned or full S).
        # 1/sqrt(hd) was already folded into the q-side RoPE, so no per-block scaling.
        q = q_ref[...].reshape(mq, hd)

        # Sequence position of every flattened query row (identical per rep head).
        row = qi * tq + jnp.tile(
            jax.lax.broadcasted_iota(jnp.int32, (tq, tk), 0), (rep, 1))

        def process_block(ki, masked):
            start = pl.multiple_of(ki * tk, tk)
            k_blk = k_ref[pl.ds(start, tk), :]               # (tk, hd)
            v_blk = v_ref[pl.ds(start, tk), :]
            s = jax.lax.dot_general(                          # (mq, tk), f32 MXU acc
                q, k_blk,
                dimension_numbers=(((1,), (1,)), ((), ())),
                preferred_element_type=jnp.float32)
            if masked:  # only diagonal-straddling blocks pay for the causal mask
                col = start + jax.lax.broadcasted_iota(jnp.int32, (mq, tk), 1)
                s = jnp.where(col <= row, s, _NEG_INF)
            m_prev = m_ref[...]
            m_new = jnp.maximum(m_prev, jnp.max(s, axis=-1, keepdims=True))
            alpha = jnp.exp(m_prev - m_new)
            p = jnp.exp(s - m_new)
            l_ref[...] = alpha * l_ref[...] + jnp.sum(p, axis=-1, keepdims=True)
            acc_ref[...] = alpha * acc_ref[...] + jnp.dot(
                p.astype(v_blk.dtype), v_blk, preferred_element_type=jnp.float32)
            m_ref[...] = m_new

        # KV blocks fully below the causal diagonal for every row: no mask needed.
        n_full = (qi * tq) // tk
        # Total KV blocks intersecting the causal region for this q tile (> n_full,
        # and the first masked block always contains each row's diagonal element,
        # so l > 0 and the -1e30 init never leaks into the softmax).
        n_need = pl.cdiv((qi + 1) * tq, tk)

        @pl.loop(0, n_full)
        def _(ki):
            process_block(ki, masked=False)

        @pl.loop(0, n_need - n_full)
        def _(j):
            process_block(n_full + j, masked=True)

        o_ref[...] = (acc_ref[...] * pl.reciprocal(l_ref[...], approx=True)
                      ).reshape(rep, tq, hd).astype(o_ref.dtype)

    return kernel


def pallas_flash_attention(q, k, v, *, tq_target=256, tk_target=256):
    """Causal flash attention.

    q: (B, H, S, hd); k, v: (B, Hkv, S, hd) with H % Hkv == 0.
    GQA: kv head = query head // rep (matches torch repeat_interleave).
    """
    B, H, S, hd = q.shape
    _, Hkv, Sk, hdk = k.shape
    assert Sk == S and hdk == hd and H % Hkv == 0
    rep = H // Hkv
    tq = _pick_tile(S, tq_target, 8)
    tk = _pick_tile(S, tk_target, 8)
    nq = S // tq
    kernel = _make_flash_kernel(tq, tk, rep, hd)

    # Grid: (batch, kv-head group, q tile). K/V block index depends only on (b, g),
    # so K/V is DMA'd once per group and reused across all q tiles / rep heads.
    q_spec = pl.BlockSpec((None, rep, tq, hd), lambda b, g, qi: (b, g, qi, 0))
    kv_spec = pl.BlockSpec((None, None, S, hd), lambda b, g, qi: (b, g, 0, 0))
    o_spec = pl.BlockSpec((None, rep, tq, hd), lambda b, g, qi: (b, g, qi, 0))

    return pl.pallas_call(
        kernel,
        out_shape=jax.ShapeDtypeStruct((B, H, S, hd), q.dtype),
        grid=(B, Hkv, nq),
        in_specs=[q_spec, kv_spec, kv_spec],
        out_specs=o_spec,
        scratch_shapes=[
            pltpu.VMEM((rep * tq, 1), jnp.float32),    # running max m
            pltpu.VMEM((rep * tq, 1), jnp.float32),    # running denom l
            pltpu.VMEM((rep * tq, hd), jnp.float32),   # output accumulator
        ],
        compiler_params=pltpu.CompilerParams(
            dimension_semantics=("parallel", "parallel", "parallel"),
            vmem_limit_bytes=_VMEM_LIMIT),
    )(q, k, v)


# ------------------------------ JAX glue ------------------------------

def apply_rotary_emb(x, freqs_cis):
    """x: (B, S, H, hd), freqs_cis: (S, hd//2, 2) [cos, sin], interleaved-pair RoPE."""
    B, S, H, hd = x.shape
    xf = x.astype(jnp.float32).reshape(B, S, H, hd // 2, 2)
    fc = freqs_cis.astype(jnp.float32).reshape(1, S, 1, hd // 2, 2)
    x0, x1 = xf[..., 0], xf[..., 1]
    c, s = fc[..., 0], fc[..., 1]
    out = jnp.stack([x0 * c - x1 * s, x1 * c + x0 * s], axis=-1)
    return out.reshape(B, S, H, hd).astype(x.dtype)


def precompute_freqs_cis(seq_len, head_dim, base=10000.0):
    freqs = 1.0 / (base ** (jnp.arange(0, head_dim, 2, dtype=jnp.float32) / head_dim))
    t = jnp.arange(seq_len, dtype=jnp.float32)
    angles = jnp.outer(t, freqs)  # (S, hd//2)
    return jnp.stack([jnp.cos(angles), jnp.sin(angles)], axis=-1)  # (S, hd//2, 2)


def attention_forward(x, wqkv, wo, freqs_cis, n_head, n_kv_head):
    """Mirrors Attention.forward with mask=None, kv_cache=None, eval mode."""
    B, S, D = x.shape
    head_dim = D // n_head
    kv_size = n_kv_head * head_dim
    scale = 1.0 / math.sqrt(head_dim)

    qkv = pallas_linear(x.reshape(B * S, D), wqkv).reshape(B, S, D + 2 * kv_size)
    xq = qkv[..., :D].reshape(B, S, n_head, head_dim)
    xk = qkv[..., D:D + kv_size].reshape(B, S, n_kv_head, head_dim)
    xv = qkv[..., D + kv_size:].reshape(B, S, n_kv_head, head_dim)

    # Fold the 1/sqrt(hd) softmax scale into the q-side rotation (scaling cos & sin
    # scales the rotated q) — the flash kernel never rescales q per KV block.
    xq = apply_rotary_emb(xq, freqs_cis * scale)
    xk = apply_rotary_emb(xk, freqs_cis)

    q = xq.transpose(0, 2, 1, 3)   # (B, H, S, hd)
    k = xk.transpose(0, 2, 1, 3)   # (B, Hkv, S, hd)  -- no jnp.repeat for GQA
    v = xv.transpose(0, 2, 1, 3)

    out = pallas_flash_attention(q, k, v)             # (B, H, S, hd)
    out = out.transpose(0, 2, 1, 3).reshape(B * S, D)
    out = pallas_linear(out, wo).reshape(B, S, D)
    # attn_dropout / resid_dropout: identities in eval mode
    return out


# --------------------------- pure-JAX reference ---------------------------

def reference_forward(x, wqkv, wo, freqs_cis, n_head, n_kv_head):
    B, S, D = x.shape
    head_dim = D // n_head
    kv_size = n_kv_head * head_dim
    qkv = jnp.einsum("bsd,od->bso", x, wqkv, precision=jax.lax.Precision.HIGHEST)
    xq = qkv[..., :D].reshape(B, S, n_head, head_dim)
    xk = qkv[..., D:D + kv_size].reshape(B, S, n_kv_head, head_dim)
    xv = qkv[..., D + kv_size:].reshape(B, S, n_kv_head, head_dim)
    xq = apply_rotary_emb(xq, freqs_cis)
    xk = apply_rotary_emb(xk, freqs_cis)
    q = xq.transpose(0, 2, 1, 3)
    k = jnp.repeat(xk.transpose(0, 2, 1, 3), n_head // n_kv_head, axis=1)
    v = jnp.repeat(xv.transpose(0, 2, 1, 3), n_head // n_kv_head, axis=1)
    scale = 1.0 / math.sqrt(head_dim)
    s = jnp.einsum("bhqd,bhkd->bhqk", q, k, precision=jax.lax.Precision.HIGHEST) * scale
    mask = jnp.tril(jnp.ones((S, S), dtype=bool))
    s = jnp.where(mask[None, None], s, -jnp.inf)
    p = jax.nn.softmax(s, axis=-1)
    o = jnp.einsum("bhqk,bhkd->bhqd", p, v, precision=jax.lax.Precision.HIGHEST)
    o = o.transpose(0, 2, 1, 3).reshape(B, S, D)
    return jnp.einsum("bsd,od->bso", o, wo, precision=jax.lax.Precision.HIGHEST)


# --------------------------------- main ---------------------------------

if __name__ == "__main__":
    # Small config consistent with ModelArgs (dim % n_head == 0); GQA exercised.
    dim, n_head, n_kv_head = 32, 4, 2
    head_dim = dim // n_head
    B, S = 2, 8
    total_kv_dim = (n_head + 2 * n_kv_head) * head_dim

    key = jax.random.PRNGKey(0)
    kx, kq, ko = jax.random.split(key, 3)
    x = jax.random.normal(kx, (B, S, dim), dtype=jnp.float32)
    # PyTorch nn.Linear weight layout: (out_features, in_features).
    wqkv = 0.02 * jax.random.normal(kq, (total_kv_dim, dim), dtype=jnp.float32)
    wo = 0.02 * jax.random.normal(ko, (dim, dim), dtype=jnp.float32)
    freqs_cis = precompute_freqs_cis(S, head_dim)

    out = attention_forward(x, wqkv, wo, freqs_cis, n_head, n_kv_head)
    out = jax.block_until_ready(out)

    ref = reference_forward(x, wqkv, wo, freqs_cis, n_head, n_kv_head)
    assert out.shape == (B, S, dim)
    assert jnp.allclose(out, ref, atol=1e-3, rtol=1e-2), "mismatch vs reference"

    print("KERNEL_OK")
</pallas_src>

<mosaic_0001>
module attributes {stable_mosaic.version = 11 : i64} {
  func.func @_linear_kernel(%arg0: i32, %arg1: i32, %arg2: i32, %arg3: memref<16x32xf32, #tpu.memory_space<vmem>>, %arg4: memref<32x64xf32, #tpu.memory_space<vmem>>, %arg5: memref<16x64xf32, #tpu.memory_space<vmem>>, %arg6: memref<16x64xf32, #tpu.memory_space<vmem>>) attributes {dimension_semantics = [#tpu.dimension_semantics<parallel>, #tpu.dimension_semantics<parallel>, #tpu.dimension_semantics<arbitrary>], iteration_bounds = array<i64: 1, 1, 1>, scalar_prefetch = 0 : i64, scratch_operands = 1 : i64, tpu.core_type = #tpu.core_type<tc>, window_params = [{transform_indices = @transform_0, window_bounds = array<i64: 16, 32>}, {transform_indices = @transform_1, window_bounds = array<i64: 32, 64>}, {transform_indices = @transform_2, window_bounds = array<i64: 16, 64>}]} {
    %c0_i32 = arith.constant 0 : i32
    %0 = arith.cmpi eq, %arg2, %c0_i32 : i32
    %1 = arith.extui %0 : i1 to i32
    %c0_i32_0 = arith.constant 0 : i32
    %2 = arith.cmpi ne, %1, %c0_i32_0 : i32
    scf.if %2 {
      %cst_10 = arith.constant 0.000000e+00 : f32
      %12 = vector.broadcast %cst_10 : f32 to vector<16x64xf32>
      %c0_11 = arith.constant 0 : index
      %c0_12 = arith.constant 0 : index
      %13 = vector.load %arg6[%c0_11, %c0_12] : memref<16x64xf32, #tpu.memory_space<vmem>>, vector<16x64xf32>
      tpu.vector_store %arg6[%c0_11, %c0_12], %12 {strides = array<i32>} : memref<16x64xf32, #tpu.memory_space<vmem>>, vector<16x64xf32>,
    } else {
    }
    %c0 = arith.constant 0 : index
    %c0_1 = arith.constant 0 : index
    %3 = vector.load %arg6[%c0, %c0_1] : memref<16x64xf32, #tpu.memory_space<vmem>>, vector<16x64xf32>
    %c0_2 = arith.constant 0 : index
    %c0_3 = arith.constant 0 : index
    %4 = vector.load %arg3[%c0_2, %c0_3] : memref<16x32xf32, #tpu.memory_space<vmem>>, vector<16x32xf32>
    %c0_4 = arith.constant 0 : index
    %c0_5 = arith.constant 0 : index
    %5 = vector.load %arg4[%c0_4, %c0_5] : memref<32x64xf32, #tpu.memory_space<vmem>>, vector<32x64xf32>
    %cst = arith.constant dense<0.000000e+00> : vector<16x64xf32>
    %6 = tpu.matmul %4, %5, %cst {dimension_numbers = #tpu.dot_dimension_numbers<[1], [0], [0], [1], [0, 0, 1, 1], [], []>} : vector<16x32xf32>, vector<32x64xf32>, vector<16x64xf32> -> vector<16x64xf32>
    %7 = arith.addf %3, %6 : vector<16x64xf32>
    %c0_6 = arith.constant 0 : index
    %c0_7 = arith.constant 0 : index
    %8 = vector.load %arg6[%c0_6, %c0_7] : memref<16x64xf32, #tpu.memory_space<vmem>>, vector<16x64xf32>
    tpu.vector_store %arg6[%c0_6, %c0_7], %7 {strides = array<i32>} : memref<16x64xf32, #tpu.memory_space<vmem>>, vector<16x64xf32>,
    %c0_i32_8 = arith.constant 0 : i32
    %9 = arith.cmpi eq, %arg2, %c0_i32_8 : i32
    %10 = arith.extui %9 : i1 to i32
    %c0_i32_9 = arith.constant 0 : i32
    %11 = arith.cmpi ne, %10, %c0_i32_9 : i32
    scf.if %11 {
      %c0_10 = arith.constant 0 : index
      %c0_11 = arith.constant 0 : index
      %12 = vector.load %arg6[%c0_10, %c0_11] : memref<16x64xf32, #tpu.memory_space<vmem>>, vector<16x64xf32>
      %c0_12 = arith.constant 0 : index
      %c0_13 = arith.constant 0 : index
      %13 = vector.load %arg5[%c0_12, %c0_13] : memref<16x64xf32, #tpu.memory_space<vmem>>, vector<16x64xf32>
      tpu.vector_store %arg5[%c0_12, %c0_13], %12 {strides = array<i32>} : memref<16x64xf32, #tpu.memory_space<vmem>>, vector<16x64xf32>,
    } else {
    }
    return
  }
  func.func @transform_0(%arg0: i32, %arg1: i32, %arg2: i32) -> (i32, i32) {
    %c0_i32 = arith.constant 0 : i32
    return %arg0, %arg2 : i32, i32
  }
  func.func @transform_1(%arg0: i32, %arg1: i32, %arg2: i32) -> (i32, i32) {
    %c0_i32 = arith.constant 0 : i32
    return %arg2, %arg1 : i32, i32
  }
  func.func @transform_2(%arg0: i32, %arg1: i32, %arg2: i32) -> (i32, i32) {
    %c0_i32 = arith.constant 0 : i32
    return %arg0, %arg1 : i32, i32
  }
}

</mosaic_0001>

<llo_original>
// kernel: tpu_custom_call.1
$region0: #{tpu_custom_call.1}
  #allocation0 [shape = 'u32[]', space=smem, size = 0x4, offset = 0x4, fixed_abs, tag = 'smem constant byte address 0x4 - core index']
  #allocation1 [shape = 'u32[72,128]{1,0:T(1,128)}', space=vmem, size = 0x9000, scoped, tag = 'internal scratch']
  #allocation2 [shape = 'f32[16,64]{1,0:T(8,128)}', space=vmem, size = 0x2000, scoped, tag = 'scratch operand']
  %s0 = inlined_call_operand.hbm [shape: f32[16,32], index: 0, kind: input, shape index: {}]
  %s1 = inlined_call_operand.hbm [shape: f32[32,64], index: 1, kind: input, shape index: {}]
  %s2 = inlined_call_operand.hbm [shape: f32[16,64], index: 2, kind: output, shape index: {}]
  %s3 = sld [smem:[#allocation0]]
  $region34: #{tpu_custom_call.1} parent=0
    _
  %s5 = ssub.s32 1, %s3
  %s6 = scalar_select 0, %s5, %s3
  $region1: #{tpu_custom_call.1} parent=0
    #allocation3 [shape = 'u8[8192]{0}', space=vmem, size = 0x2000, scoped, tag = 'input window, operand 0, single buffered']
    #allocation4 [shape = 's32[1]{0}', space=sflag, size = 0x4, scoped, tag = 'scoped memory for tpu_custom_call.1']
    #allocation5 [shape = 's32[1]{0}', space=sflag, size = 0x4, scoped, tag = 'scoped memory for tpu_custom_call.1']
    #allocation6 [shape = 'u8[16384]{0}', space=vmem, size = 0x4000, scoped, tag = 'input window, operand 1, single buffered']
    #allocation7 [shape = 's32[1]{0}', space=sflag, size = 0x4, scoped, tag = 'scoped memory for tpu_custom_call.1']
    #allocation8 [shape = 'u8[8192]{0}', space=vmem, size = 0x2000, scoped, tag = 'output window, operand 0, single buffered']
    %7 = vsyncpa [#allocation4], 0
    %8 = vsyncpa [#allocation7], 0
    %9 = vsyncpa [#allocation5], 0
    // Predicated region
    $region2: #{tpu_custom_call.1} parent=1 // pred_check
      _
    $region3: #{tpu_custom_call.1} parent=1 // pred_check_branch
      %11 = sbr.rel (0) target = $region5
    $region4: #{tpu_custom_call.1} parent=1 // pred_region
      %13 = vsyncadd [#allocation4], 0
      %s14 = sshll.u32 %s0, 4
      %s15 = int_to_ptr.hbm [resolvable:$true] %s14
      %s16 = sshll.u32 [#allocation3], 4
      %s17 = int_to_ptr.vmem [resolvable:$true] %s16
      %22 = dma.hbm_to_vmem [thread:$0]  %s15, 256, %s17, [#allocation4], 128, 128, 8
    $region5: #{tpu_custom_call.1} parent=1 // pred_fallthru
      _
    // Predicated region
    $region6: #{tpu_custom_call.1} parent=1 // pred_check
      _
    $region7: #{tpu_custom_call.1} parent=1 // pred_check_branch
      %24 = sbr.rel (0) target = $region9
    $region8: #{tpu_custom_call.1} parent=1 // pred_region
      %26 = vsyncadd [#allocation7], 0
      %s27 = sshll.u32 %s1, 4
      %s28 = int_to_ptr.hbm [resolvable:$true] %s27
      %s29 = sshll.u32 [#allocation6], 4
      %s30 = int_to_ptr.vmem [resolvable:$true] %s29
      %35 = dma.hbm_to_vmem [thread:$0]  %s28, 512, %s30, [#allocation7], 128, 128, 8
    $region9: #{tpu_custom_call.1} parent=1 // pred_fallthru
      _
    // Predicated region
    $region10: #{tpu_custom_call.1} parent=1 // pred_check
      _
    $region11: #{tpu_custom_call.1} parent=1 // pred_check_branch
      %37 = sbr.rel (0) target = $region13
    $region12: #{tpu_custom_call.1} parent=1 // pred_region
      %39 = dma.done [#allocation4], 256
    $region13: #{tpu_custom_call.1} parent=1 // pred_fallthru
      _
    // Predicated region
    $region14: #{tpu_custom_call.1} parent=1 // pred_check
      _
    $region15: #{tpu_custom_call.1} parent=1 // pred_check_branch
      %41 = sbr.rel (0) target = $region17
    $region16: #{tpu_custom_call.1} parent=1 // pred_region
      %43 = dma.done [#allocation7], 512
    $region17: #{tpu_custom_call.1} parent=1 // pred_fallthru
      _
    %p44 = scmp.eq.s32.totalorder 0, 0
    // Predicated region
    $region18: #{tpu_custom_call.1} parent=1 // pred_check
      %p45 = pneg %p44
    $region19: #{tpu_custom_call.1} parent=1 // pred_check_branch
      %47 = sbr.rel (%p45) target = $region21
    $region20: #{tpu_custom_call.1} parent=1 // pred_region
      %vm48 = vcmask 523264
      %49 = vst.msk [vmem:[#allocation2] sm:$0xff] %vm48, 0.0
      %50 = vst.msk [vmem:[#allocation2 + $0x8] sm:$0xff] %vm48, 0.0
    $region21: #{tpu_custom_call.1} parent=1 // pred_fallthru
      _
    %v51 = vld [vmem:[#allocation2] sm:$0xff]
    %v52 = vld [vmem:[#allocation2 + $0x8] sm:$0xff]
    %v53 = vld [vmem:[#allocation3] sm:$0xff]
    %v54 = vld [vmem:[#allocation3 + $0x8] sm:$0xff]
    %v55 = vld [vmem:[#allocation6] sm:$0xff]
    %v56 = vld [vmem:[#allocation6 + $0x8] sm:$0xff]
    %v57 = vld [vmem:[#allocation6 + $0x10] sm:$0xff]
    %v58 = vld [vmem:[#allocation6 + $0x18] sm:$0xff]
    %vm59 = vcmask 261120
    %v61 = vsel %vm59, %v53, 0
    %v64 = vsel %vm59, %v54, 0
    %66 = vmatpush.msra.mxu0 0.0
    %67 = vmatpush.msra.mxu0 0.0
    %68 = vmatpush.msra.mxu0 0.0
    %69 = vmatpush.msra.mxu0 0.0
    %70 = vmatpush.msra.mxu0 0.0
    %71 = vmatpush.msra.mxu0 0.0
    %72 = vmatpush.msra.mxu0 0.0
    %73 = vmatpush.msra.mxu0 0.0
    %74 = vmatpush.msra.mxu0 0.0
    %75 = vmatpush.msra.mxu0 0.0
    %76 = vmatpush.msra.mxu0 0.0
    %77 = vmatpush.msra.mxu0 0.0
    %78 = vmatpush.msra.mxu0 %v58
    %79 = vmatpush.msra.mxu0 %v57
    %80 = vmatpush.msra.mxu0 %v56
    %81 = vmatpush.msra.mxu0 %v55
    %82 = vmatmul.f32.gmra.mxu0 %v61
    %v83 = vpop.f32.mrf.mxu0
    %v84 = vadd.f32 0.0, %v83
    %85 = vmatmul.f32.gmra.mxu0 %v64
    %v86 = vpop.f32.mrf.mxu0
    %v87 = vadd.f32 0.0, %v86
    %88 = vdwg.mxu0
    %v89 = vadd.f32 %v51, %v84
    %v90 = vadd.f32 %v52, %v87
    %vm91 = vcmask 523264
    %92 = vst.msk [vmem:[#allocation2] sm:$0xff] %vm91, %v89
    %93 = vst.msk [vmem:[#allocation2 + $0x8] sm:$0xff] %vm91, %v90
    // Predicated region
    $region22: #{tpu_custom_call.1} parent=1 // pred_check
      %p94 = pneg %p44
    $region23: #{tpu_custom_call.1} parent=1 // pred_check_branch
      %96 = sbr.rel (%p94) target = $region25
    $region24: #{tpu_custom_call.1} parent=1 // pred_region
      %v97 = vld [vmem:[#allocation2] sm:$0xff]
      %v98 = vld [vmem:[#allocation2 + $0x8] sm:$0xff]
      %99 = vst.msk [vmem:[#allocation8] sm:$0xff] %vm91, %v97
      %100 = vst.msk [vmem:[#allocation8 + $0x8] sm:$0xff] %vm91, %v98
    $region25: #{tpu_custom_call.1} parent=1 // pred_fallthru
      _
    // Predicated region
    $region26: #{tpu_custom_call.1} parent=1 // pred_check
      _
    $region27: #{tpu_custom_call.1} parent=1 // pred_check_branch
      %102 = sbr.rel (0) target = $region29
    $region28: #{tpu_custom_call.1} parent=1 // pred_region
      %104 = vsyncadd [#allocation5], 0
      %s105 = sshll.u32 [#allocation8], 4
      %s106 = int_to_ptr.vmem [resolvable:$true] %s105
      %s107 = sshll.u32 %s2, 4
      %s108 = int_to_ptr.hbm [resolvable:$true] %s107
      %113 = dma.vmem_to_hbm [thread:$0]  %s106, 256, %s108, [#allocation5], 128, 128, 8
    $region29: #{tpu_custom_call.1} parent=1 // pred_fallthru
      _
    // Predicated region
    $region30: #{tpu_custom_call.1} parent=1 // pred_check
      _
    $region31: #{tpu_custom_call.1} parent=1 // pred_check_branch
      %115 = sbr.rel (0) target = $region33
    $region32: #{tpu_custom_call.1} parent=1 // pred_region
      %117 = dma.done [#allocation5], 256
    $region33: #{tpu_custom_call.1} parent=1 // pred_fallthru
      _
    %118 = vsyncpa [#allocation4], 1
    %119 = vsyncpa [#allocation7], 1
    %120 = vsyncpa [#allocation5], 1

</llo_original>
